<compile_context>
chip_gen: v7x
topology: tpu7x:2x2x1
jax: 0.10.0
libtpu: 0.0.40
codegen_flags: <defaults>
</compile_context>

<pallas_src>
import jax
import jax.numpy as jnp
from jax.experimental import pallas as pl
from jax.experimental.pallas import tpu as pltpu


def _round_up(v, m):
    return ((v + m - 1) // m) * m


def _h_swish_kernel(x_ref, o_ref):
    x = x_ref[...]
    # relu6(x + 3) / 6  ==  clip(x + 3, 0, 6) * (1/6)
    o_ref[...] = x * (jnp.clip(x + 3.0, 0.0, 6.0) * (1.0 / 6.0))


def h_swish(x, *, lane_cols=512, max_block_rows=512):
    """PyTorch h_swish forward (x * relu6(x + 3) / 6) as a tiled Pallas TPU kernel.

    Works for any input shape/dtype; internally reshapes to a lane-dense
    (rows, lane_cols) layout and tiles rows over a 1-D grid.
    """
    orig_shape = x.shape
    orig_dtype = x.dtype
    flat = x.reshape(-1)
    n = flat.shape[0]

    # Lane-dense 2D layout: last dim a multiple of 128 (here 512).
    rows = pl.cdiv(n, lane_cols)
    block_rows = min(_round_up(rows, 8), max_block_rows)   # multiple of 8 sublanes
    rows_p = _round_up(rows, block_rows)
    n_p = rows_p * lane_cols
    if n_p != n:
        # Zero padding is harmless: h_swish(0) == 0, and the tail is sliced off.
        flat = jnp.pad(flat, (0, n_p - n))
    x2 = flat.reshape(rows_p, lane_cols)

    out = pl.pallas_call(
        _h_swish_kernel,
        out_shape=jax.ShapeDtypeStruct((rows_p, lane_cols), orig_dtype),
        grid_spec=pltpu.PrefetchScalarGridSpec(
            num_scalar_prefetch=0,
            grid=(rows_p // block_rows,),
            in_specs=[pl.BlockSpec((block_rows, lane_cols), lambda i: (i, 0))],
            out_specs=pl.BlockSpec((block_rows, lane_cols), lambda i: (i, 0)),
        ),
        compiler_params=pltpu.CompilerParams(
            dimension_semantics=("parallel",)),
    )(x2)

    return out.reshape(-1)[:n].reshape(orig_shape)


if __name__ == "__main__":
    key = jax.random.PRNGKey(0)
    x = jax.random.normal(key, (2, 4, 16, 16), jnp.float32)

    fwd = jax.jit(h_swish)
    out = jax.block_until_ready(fwd(x))
    assert out.shape == x.shape, out.shape

    # Reference check against the PyTorch semantics: x * relu6(x + 3) / 6.
    ref = x * jnp.clip(x + 3.0, 0.0, 6.0) / 6.0
    max_err = float(jnp.max(jnp.abs(out - ref)))
    assert jnp.allclose(out, ref, atol=1e-6, rtol=1e-6), max_err

    print("KERNEL_OK")
</pallas_src>

<mosaic_0001>
module attributes {stable_mosaic.version = 11 : i64} {
  func.func @_h_swish_kernel(%arg0: i32, %arg1: memref<8x512xf32, #tpu.memory_space<vmem>>, %arg2: memref<8x512xf32, #tpu.memory_space<vmem>>) attributes {dimension_semantics = [#tpu.dimension_semantics<parallel>], iteration_bounds = array<i64: 1>, scalar_prefetch = 0 : i64, scratch_operands = 0 : i64, tpu.core_type = #tpu.core_type<tc>, window_params = [{transform_indices = @transform_0, window_bounds = array<i64: 8, 512>}, {transform_indices = @transform_1, window_bounds = array<i64: 8, 512>}]} {
    %c0 = arith.constant 0 : index
    %c0_0 = arith.constant 0 : index
    %0 = vector.load %arg1[%c0, %c0_0] : memref<8x512xf32, #tpu.memory_space<vmem>>, vector<8x512xf32>
    %cst = arith.constant 3.000000e+00 : f32
    %1 = vector.broadcast %cst : f32 to vector<8x512xf32>
    %2 = arith.addf %0, %1 : vector<8x512xf32>
    %cst_1 = arith.constant 0.000000e+00 : f32
    %cst_2 = arith.constant 6.000000e+00 : f32
    %3 = vector.broadcast %cst_1 : f32 to vector<8x512xf32>
    %4 = arith.maximumf %3, %2 : vector<8x512xf32>
    %5 = vector.broadcast %cst_2 : f32 to vector<8x512xf32>
    %6 = arith.minimumf %5, %4 : vector<8x512xf32>
    %cst_3 = arith.constant 0.166666672 : f32
    %7 = vector.broadcast %cst_3 : f32 to vector<8x512xf32>
    %8 = arith.mulf %6, %7 : vector<8x512xf32>
    %9 = arith.mulf %0, %8 : vector<8x512xf32>
    %c0_4 = arith.constant 0 : index
    %c0_5 = arith.constant 0 : index
    %10 = vector.load %arg2[%c0_4, %c0_5] : memref<8x512xf32, #tpu.memory_space<vmem>>, vector<8x512xf32>
    tpu.vector_store %arg2[%c0_4, %c0_5], %9 {strides = array<i32>} : memref<8x512xf32, #tpu.memory_space<vmem>>, vector<8x512xf32>,
    return
  }
  func.func @transform_0(%arg0: i32) -> (i32, i32) {
    %c0_i32 = arith.constant 0 : i32
    %c0_i32_0 = arith.constant 0 : i32
    return %arg0, %c0_i32 : i32, i32
  }
  func.func @transform_1(%arg0: i32) -> (i32, i32) {
    %c0_i32 = arith.constant 0 : i32
    %c0_i32_0 = arith.constant 0 : i32
    return %arg0, %c0_i32 : i32, i32
  }
}

</mosaic_0001>

<llo_original>
// kernel: h_swish.1
$region0: #{h_swish.1}
  #allocation0 [shape = 'u32[]', space=smem, size = 0x4, offset = 0x4, fixed_abs, tag = 'smem constant byte address 0x4 - core index']
  #allocation1 [shape = 'u32[144,128]{1,0:T(1,128)}', space=vmem, size = 0x12000, scoped, tag = 'internal scratch']
  %s0 = inlined_call_operand.vmem [shape: f32[8,512], index: 0, kind: input, shape index: {}]
  %s1 = inlined_call_operand.vmem [shape: f32[8,512], index: 1, kind: output, shape index: {}]
  %s2 = sld [smem:[#allocation0]]
  $region14: #{h_swish.1} parent=0
    _
  %s4 = ssub.s32 1, %s2
  %s5 = scalar_select 0, %s4, %s2
  // Predicated region
  $region2: #{h_swish.1} parent=0 // pred_check
    _
  $region3: #{h_swish.1} parent=0 // pred_check_branch
    %7 = sbr.rel (0) target = $region5
  $region4: #{h_swish.1} parent=0 // pred_region
    _
  $region5: #{h_swish.1} parent=0 // pred_fallthru
    _
  %v8 = vld [vmem:[%s0] sm:$0xff]
  %v9 = vld [vmem:[%s0 + $0x8] sm:$0xff]
  %v10 = vld [vmem:[%s0 + $0x10] sm:$0xff]
  %v11 = vld [vmem:[%s0 + $0x18] sm:$0xff]
  %v12 = vadd.f32 %v8, 3.0
  %v13 = vadd.f32 %v9, 3.0
  %v14 = vadd.f32 %v10, 3.0
  %v15 = vadd.f32 %v11, 3.0
  %v16 = vmax.f32 %v12, 0.0
  %v17 = vmax.f32 %v13, 0.0
  %v18 = vmax.f32 %v14, 0.0
  %v19 = vmax.f32 %v15, 0.0
  %v20 = vmin.f32 %v16, 6.0
  %v21 = vmin.f32 %v17, 6.0
  %v22 = vmin.f32 %v18, 6.0
  %v23 = vmin.f32 %v19, 6.0
  %v24 = vmul.f32 %v20, 0.16666667
  %v25 = vmul.f32 %v21, 0.16666667
  %v26 = vmul.f32 %v22, 0.16666667
  %v27 = vmul.f32 %v23, 0.16666667
  %v28 = vmul.f32 %v8, %v24
  %v29 = vmul.f32 %v9, %v25
  %v30 = vmul.f32 %v10, %v26
  %v31 = vmul.f32 %v11, %v27
  %32 = vst [vmem:[%s1] sm:$0xff] %v28
  %33 = vst [vmem:[%s1 + $0x8] sm:$0xff] %v29
  %34 = vst [vmem:[%s1 + $0x10] sm:$0xff] %v30
  %35 = vst [vmem:[%s1 + $0x18] sm:$0xff] %v31
  // Predicated region
  $region6: #{h_swish.1} parent=0 // pred_check
    _
  $region7: #{h_swish.1} parent=0 // pred_check_branch
    %37 = sbr.rel (0) target = $region9
  $region8: #{h_swish.1} parent=0 // pred_region
    _
  $region9: #{h_swish.1} parent=0 // pred_fallthru
    _
  // Predicated region
  $region10: #{h_swish.1} parent=0 // pred_check
    _
  $region11: #{h_swish.1} parent=0 // pred_check_branch
    %39 = sbr.rel (0) target = $region13
  $region12: #{h_swish.1} parent=0 // pred_region
    _
  $region13: #{h_swish.1} parent=0 // pred_fallthru
    _

</llo_original>
